<compile_context>
chip_gen: v7x
topology: tpu7x:2x2x1
jax: 0.10.0
libtpu: 0.0.40
codegen_flags: <defaults>
</compile_context>

<pallas_src>
import functools

import jax
import jax.numpy as jnp
from jax.experimental import pallas as pl
from jax.experimental.pallas import tpu as pltpu

_LANE = 128
_SUBLANE = 8
_SQRT_HALF = 0.7071067811865476


def _round_up(x, m):
    return ((x + m - 1) // m) * m


def _largest_dividing_tile(dim, cap):
    """Largest multiple of 128 that divides `dim` and is <= cap."""
    best = _LANE
    t = _LANE
    cap = min(cap, dim)
    while t <= cap:
        if dim % t == 0:
            best = t
        t += _LANE
    return best


def _pick_tiles(B, D_pad):
    # TM: one round_up(B,8) tile for small B (minimal padding); for big B pick
    # from {512,256,128} minimizing padded rows (tie-break to the bigger tile,
    # which also cuts redundant weight re-reads).
    if B <= 512:
        TM = _round_up(B, _SUBLANE)
    else:
        TM = min((512, 256, 128), key=lambda t: (_round_up(B, t), -t))
    B_pad = _round_up(B, TM)

    # TN: keep >= 2 N-tiles when possible so both v7x TensorCores get work
    # even when there is only a single M tile (no-op on single-TC v5e/v6e).
    if D_pad % 256 == 0 and D_pad // 256 >= 2:
        TN = 256
    else:
        TN = _LANE

    # TK: grow toward the full reduction dim (fewer grid steps, larger DMAs),
    # capped so the double-buffered working set stays well inside VMEM on all
    # generations (incl. v7x's 64 MiB physical VMEM).
    TK = _largest_dividing_tile(D_pad, 2048)
    return TM, TN, TK, B_pad


def _gelu_exact(h):
    # Exact erf GELU: matches torch.nn.GELU() default numerics.
    return 0.5 * h * (1.0 + jax.lax.erf(h * _SQRT_HALF))


def _block_kernel(x_mm_ref, w_ref, b_ref, x_res_ref, o_ref, acc_ref):
    """One (TM, TN) output tile, accumulating over the K grid axis.

    x_mm_ref : (TM, TK) matmul input tile        (indexed by (i, k))
    w_ref    : (TK, TN) weight tile              (indexed by (k, j))
    b_ref    : (1,  TN) bias tile                (indexed by (0, j))
    x_res_ref: (TM, TN) residual input tile      (indexed by (i, j))
    o_ref    : (TM, TN) output tile              (indexed by (i, j))
    acc_ref  : (TM, TN) f32 VMEM accumulator
    """
    k = pl.program_id(2)

    @pl.when(k == 0)
    def _():
        acc_ref[...] = jnp.zeros_like(acc_ref)

    # Pure MXU accumulation over the K (input-feature) axis.
    acc_ref[...] += jnp.dot(
        x_mm_ref[...], w_ref[...], preferred_element_type=jnp.float32
    )

    @pl.when(k == pl.num_programs(2) - 1)
    def _():
        # Epilogue (once per output tile): bias + exact-erf GELU + residual.
        # TODO(synk): tanh-approx GELU would move this to the EUP slot, but
        # exact erf is kept to match torch.nn.GELU() default numerics.
        h = acc_ref[...] + b_ref[...].astype(jnp.float32)
        g = 0.5 * h * (1.0 + jax.lax.erf(h * jnp.float32(_SQRT_HALF)))
        o_ref[...] = (g + x_res_ref[...].astype(jnp.float32)).astype(o_ref.dtype)


def prepare_block_params(w, b, compute_dtype=None):
    """Pad (and optionally cast) the Linear parameters ONCE, not per call.

    w : [D_in, D_out]  (transposed vs torch nn.Linear.weight [out, in])
    b : [D_out]
    compute_dtype : optional dtype for the MXU operands (e.g. jnp.bfloat16 on
        bf16-native v6e/v7x MXUs).  Accumulation/epilogue stay f32.
    """
    D_in, D_out = w.shape
    assert D_in == D_out, "residual add requires input_dim == output_dim"
    D = D_in
    D_pad = _round_up(D, _LANE)
    w_dtype = w.dtype if compute_dtype is None else jnp.dtype(compute_dtype)
    # Zero padding keeps padded output columns exactly zero before slicing.
    wp = jnp.zeros((D_pad, D_pad), w_dtype).at[:D, :D].set(w.astype(w_dtype))
    bp = jnp.zeros((1, D_pad), jnp.float32).at[0, :D].set(b.astype(jnp.float32))
    return dict(w=w, b=b, wp=wp, bp=bp, D=D, D_pad=D_pad,
                compute_dtype=jnp.dtype(w_dtype))


def block_forward(x, params, *, use_pallas=None):
    """y = GELU(x @ w + b) + x   (Block.forward in eval mode)."""
    B, D = x.shape
    assert D == params["D"], "input feature dim mismatch"
    D_pad = params["D_pad"]
    TM, TN, TK, B_pad = _pick_tiles(B, D_pad)

    if use_pallas is None:
        # Tiny problems are pure padding + launch overhead: let XLA fuse them.
        use_pallas = (B_pad * D_pad * D_pad) >= (1 << 21)

    if not use_pallas:
        h = (x.astype(jnp.float32) @ params["w"].astype(jnp.float32)
             + params["b"].astype(jnp.float32))
        return (_gelu_exact(h) + x.astype(jnp.float32)).astype(x.dtype)

    compute_dtype = params["compute_dtype"]

    # Pad x only if needed; residual stream keeps the activation dtype, the
    # matmul operand is cast to the (possibly bf16) compute dtype.
    need_pad = (B_pad != B) or (D_pad != D)
    if need_pad:
        x_res = jnp.zeros((B_pad, D_pad), x.dtype).at[:B, :D].set(x)
    else:
        x_res = x
    x_mm = x_res if compute_dtype == x.dtype else x_res.astype(compute_dtype)

    grid = (B_pad // TM, D_pad // TN, D_pad // TK)

    in_bytes = jnp.dtype(compute_dtype).itemsize
    res_bytes = jnp.dtype(x.dtype).itemsize
    out_bytes = jnp.dtype(x.dtype).itemsize

    # Double-buffered working set -> explicit scoped-VMEM limit (v5e default
    # is 16 MiB; cap at 48 MiB to keep headroom on v7x's 64 MiB VMEM).
    vmem_est = (2 * TM * TK * in_bytes        # x matmul stream
                + 2 * TK * TN * in_bytes      # weights
                + 2 * TN * 4                  # bias
                + 2 * TM * TN * res_bytes     # residual stream
                + 2 * TM * TN * out_bytes     # output
                + TM * TN * 4)                # f32 accumulator
    vmem_limit = int(min(48 * 1024 * 1024, max(16 * 1024 * 1024, 2 * vmem_est)))

    cost = pl.CostEstimate(
        flops=2 * B_pad * D_pad * D_pad + 4 * B_pad * D_pad,
        transcendentals=B_pad * D_pad,
        bytes_accessed=(B_pad * D_pad * (in_bytes + res_bytes + out_bytes)
                        + D_pad * D_pad * in_bytes + D_pad * 4),
    )

    out = pl.pallas_call(
        _block_kernel,
        out_shape=jax.ShapeDtypeStruct((B_pad, D_pad), x.dtype),
        grid_spec=pltpu.PrefetchScalarGridSpec(
            num_scalar_prefetch=0,
            grid=grid,
            in_specs=[
                pl.BlockSpec((TM, TK), lambda i, j, k: (i, k)),   # x (matmul)
                pl.BlockSpec((TK, TN), lambda i, j, k: (k, j)),   # weight
                pl.BlockSpec((1, TN), lambda i, j, k: (0, j)),    # bias
                pl.BlockSpec((TM, TN), lambda i, j, k: (i, j)),   # x (residual)
            ],
            out_specs=pl.BlockSpec((TM, TN), lambda i, j, k: (i, j)),
            scratch_shapes=[pltpu.VMEM((TM, TN), jnp.float32)],
        ),
        compiler_params=pltpu.CompilerParams(
            dimension_semantics=("parallel", "parallel", "arbitrary"),
            vmem_limit_bytes=vmem_limit,
        ),
        cost_estimate=cost,
    )(x_mm, params["wp"], params["bp"], x_res)

    if need_pad:
        out = out[:B, :D]
    return out


if __name__ == "__main__":
    # Module defaults: Block(input_dim=512, output_dim=512); small batch.
    B, D = 16, 512
    key = jax.random.PRNGKey(0)
    kx, kw, kb = jax.random.split(key, 3)

    x = jax.random.normal(kx, (B, D), dtype=jnp.float32)
    # w stored [D_in, D_out] (transposed vs nn.Linear.weight's [out, in]).
    w = jax.random.normal(kw, (D, D), dtype=jnp.float32) * (1.0 / jnp.sqrt(D))
    b = jax.random.normal(kb, (D,), dtype=jnp.float32) * 0.01

    # Reference: identity norm, Linear, exact-erf GELU, identity dropout, + x.
    h_ref = x @ w + b
    ref = 0.5 * h_ref * (1.0 + jax.lax.erf(h_ref / jnp.sqrt(2.0))) + x

    # --- f32 path (bit-close to the torch reference) ----------------------
    params_f32 = prepare_block_params(w, b)           # pad/cache params ONCE
    fwd_f32 = jax.jit(functools.partial(block_forward, params=params_f32,
                                        use_pallas=True))
    out_f32 = jax.block_until_ready(fwd_f32(x))
    assert jnp.allclose(out_f32, ref, atol=1e-5, rtol=1e-5), \
        "f32 mismatch vs reference"

    # --- optional bf16-operand path (bf16-native MXUs on v6e/v7x) ---------
    params_bf16 = prepare_block_params(w, b, compute_dtype=jnp.bfloat16)
    fwd_bf16 = jax.jit(functools.partial(block_forward, params=params_bf16,
                                         use_pallas=True))
    out_bf16 = jax.block_until_ready(fwd_bf16(x))
    assert jnp.allclose(out_bf16, ref, atol=5e-2, rtol=5e-2), \
        "bf16 mismatch vs reference"

    # --- tiny-shape fast path (bypasses Pallas, plain fused XLA) ----------
    x_small = jax.random.normal(kx, (4, 32), dtype=jnp.float32)
    w_small = jax.random.normal(kw, (32, 32), dtype=jnp.float32) / jnp.sqrt(32.0)
    b_small = jax.random.normal(kb, (32,), dtype=jnp.float32) * 0.01
    p_small = prepare_block_params(w_small, b_small)
    out_small = jax.block_until_ready(block_forward(x_small, p_small))
    h_s = x_small @ w_small + b_small
    ref_s = 0.5 * h_s * (1.0 + jax.lax.erf(h_s / jnp.sqrt(2.0))) + x_small
    assert jnp.allclose(out_small, ref_s, atol=1e-5, rtol=1e-5), \
        "fast-path mismatch vs reference"

    print("KERNEL_OK")
</pallas_src>

<mosaic_0001>
module attributes {stable_mosaic.version = 11 : i64} {
  func.func @_block_kernel(%arg0: i32, %arg1: i32, %arg2: i32, %arg3: memref<16x512xf32, #tpu.memory_space<vmem>>, %arg4: memref<512x256xf32, #tpu.memory_space<vmem>>, %arg5: memref<1x256xf32, #tpu.memory_space<vmem>>, %arg6: memref<16x256xf32, #tpu.memory_space<vmem>>, %arg7: memref<16x256xf32, #tpu.memory_space<vmem>>, %arg8: memref<16x256xf32, #tpu.memory_space<vmem>>) attributes {dimension_semantics = [#tpu.dimension_semantics<parallel>, #tpu.dimension_semantics<parallel>, #tpu.dimension_semantics<arbitrary>], iteration_bounds = array<i64: 1, 2, 1>, scalar_prefetch = 0 : i64, scratch_operands = 1 : i64, tpu.core_type = #tpu.core_type<tc>, window_params = [{transform_indices = @transform_0, window_bounds = array<i64: 16, 512>}, {transform_indices = @transform_1, window_bounds = array<i64: 512, 256>}, {transform_indices = @transform_2, window_bounds = array<i64: 1, 256>}, {transform_indices = @transform_3, window_bounds = array<i64: 16, 256>}, {transform_indices = @transform_4, window_bounds = array<i64: 16, 256>}]} {
    %c0_i32 = arith.constant 0 : i32
    %0 = arith.cmpi eq, %arg2, %c0_i32 : i32
    %1 = arith.extui %0 : i1 to i32
    %c0_i32_0 = arith.constant 0 : i32
    %2 = arith.cmpi ne, %1, %c0_i32_0 : i32
    scf.if %2 {
      %cst_10 = arith.constant 0.000000e+00 : f32
      %12 = vector.broadcast %cst_10 : f32 to vector<16x256xf32>
      %c0_11 = arith.constant 0 : index
      %c0_12 = arith.constant 0 : index
      %13 = vector.load %arg8[%c0_11, %c0_12] : memref<16x256xf32, #tpu.memory_space<vmem>>, vector<16x256xf32>
      tpu.vector_store %arg8[%c0_11, %c0_12], %12 {strides = array<i32>} : memref<16x256xf32, #tpu.memory_space<vmem>>, vector<16x256xf32>,
    } else {
    }
    %c0 = arith.constant 0 : index
    %c0_1 = arith.constant 0 : index
    %3 = vector.load %arg8[%c0, %c0_1] : memref<16x256xf32, #tpu.memory_space<vmem>>, vector<16x256xf32>
    %c0_2 = arith.constant 0 : index
    %c0_3 = arith.constant 0 : index
    %4 = vector.load %arg3[%c0_2, %c0_3] : memref<16x512xf32, #tpu.memory_space<vmem>>, vector<16x512xf32>
    %c0_4 = arith.constant 0 : index
    %c0_5 = arith.constant 0 : index
    %5 = vector.load %arg4[%c0_4, %c0_5] : memref<512x256xf32, #tpu.memory_space<vmem>>, vector<512x256xf32>
    %cst = arith.constant dense<0.000000e+00> : vector<16x256xf32>
    %6 = tpu.matmul %4, %5, %cst {dimension_numbers = #tpu.dot_dimension_numbers<[1], [0], [0], [1], [0, 0, 1, 1], [], []>} : vector<16x512xf32>, vector<512x256xf32>, vector<16x256xf32> -> vector<16x256xf32>
    %7 = arith.addf %3, %6 : vector<16x256xf32>
    %c0_6 = arith.constant 0 : index
    %c0_7 = arith.constant 0 : index
    %8 = vector.load %arg8[%c0_6, %c0_7] : memref<16x256xf32, #tpu.memory_space<vmem>>, vector<16x256xf32>
    tpu.vector_store %arg8[%c0_6, %c0_7], %7 {strides = array<i32>} : memref<16x256xf32, #tpu.memory_space<vmem>>, vector<16x256xf32>,
    %c0_i32_8 = arith.constant 0 : i32
    %9 = arith.cmpi eq, %arg2, %c0_i32_8 : i32
    %10 = arith.extui %9 : i1 to i32
    %c0_i32_9 = arith.constant 0 : i32
    %11 = arith.cmpi ne, %10, %c0_i32_9 : i32
    scf.if %11 {
      %c0_10 = arith.constant 0 : index
      %c0_11 = arith.constant 0 : index
      %12 = vector.load %arg8[%c0_10, %c0_11] : memref<16x256xf32, #tpu.memory_space<vmem>>, vector<16x256xf32>
      %c0_12 = arith.constant 0 : index
      %c0_13 = arith.constant 0 : index
      %13 = vector.load %arg5[%c0_12, %c0_13] : memref<1x256xf32, #tpu.memory_space<vmem>>, vector<1x256xf32>
      %14 = vector.broadcast %13 : vector<1x256xf32> to vector<16x256xf32>
      %15 = arith.addf %12, %14 : vector<16x256xf32>
      %cst_14 = arith.constant 5.000000e-01 : f32
      %16 = vector.broadcast %cst_14 : f32 to vector<16x256xf32>
      %17 = arith.mulf %16, %15 : vector<16x256xf32>
      %cst_15 = arith.constant 0.707106769 : f32
      %18 = vector.broadcast %cst_15 : f32 to vector<16x256xf32>
      %19 = arith.mulf %15, %18 : vector<16x256xf32>
      %20 = math.erf %19 : vector<16x256xf32>
      %cst_16 = arith.constant 1.000000e+00 : f32
      %21 = vector.broadcast %cst_16 : f32 to vector<16x256xf32>
      %22 = arith.addf %21, %20 : vector<16x256xf32>
      %23 = arith.mulf %17, %22 : vector<16x256xf32>
      %c0_17 = arith.constant 0 : index
      %c0_18 = arith.constant 0 : index
      %24 = vector.load %arg6[%c0_17, %c0_18] : memref<16x256xf32, #tpu.memory_space<vmem>>, vector<16x256xf32>
      %25 = arith.addf %23, %24 : vector<16x256xf32>
      %c0_19 = arith.constant 0 : index
      %c0_20 = arith.constant 0 : index
      %26 = vector.load %arg7[%c0_19, %c0_20] : memref<16x256xf32, #tpu.memory_space<vmem>>, vector<16x256xf32>
      tpu.vector_store %arg7[%c0_19, %c0_20], %25 {strides = array<i32>} : memref<16x256xf32, #tpu.memory_space<vmem>>, vector<16x256xf32>,
    } else {
    }
    return
  }
  func.func @transform_0(%arg0: i32, %arg1: i32, %arg2: i32) -> (i32, i32) {
    %c0_i32 = arith.constant 0 : i32
    return %arg0, %arg2 : i32, i32
  }
  func.func @transform_1(%arg0: i32, %arg1: i32, %arg2: i32) -> (i32, i32) {
    %c0_i32 = arith.constant 0 : i32
    return %arg2, %arg1 : i32, i32
  }
  func.func @transform_2(%arg0: i32, %arg1: i32, %arg2: i32) -> (i32, i32) {
    %c0_i32 = arith.constant 0 : i32
    %c0_i32_0 = arith.constant 0 : i32
    return %c0_i32, %arg1 : i32, i32
  }
  func.func @transform_3(%arg0: i32, %arg1: i32, %arg2: i32) -> (i32, i32) {
    %c0_i32 = arith.constant 0 : i32
    return %arg0, %arg1 : i32, i32
  }
  func.func @transform_4(%arg0: i32, %arg1: i32, %arg2: i32) -> (i32, i32) {
    %c0_i32 = arith.constant 0 : i32
    return %arg0, %arg1 : i32, i32
  }
}

</mosaic_0001>

<llo_original>
// kernel: block_forward.1
$region0: #{block_forward.1}
  #allocation0 [shape = 'u32[]', space=smem, size = 0x4, offset = 0x4, fixed_abs, tag = 'smem constant byte address 0x4 - core index']
  #allocation1 [shape = 'u32[144,128]{1,0:T(1,128)}', space=vmem, size = 0x12000, scoped, tag = 'internal scratch']
  #allocation2 [shape = 'f32[16,256]{1,0:T(8,128)}', space=vmem, size = 0x4000, scoped, tag = 'scratch operand']
  %s0 = inlined_call_operand.hbm [shape: f32[16,512], index: 0, kind: input, shape index: {}, may-alias: {0,3}]
  %s1 = inlined_call_operand.hbm [shape: f32[512,512], index: 1, kind: input, shape index: {}]
  %s2 = inlined_call_operand.vmem [shape: f32[1,512], index: 2, kind: input, shape index: {}]
  %s3 = inlined_call_operand.hbm [shape: f32[16,512], index: 3, kind: input, shape index: {}, may-alias: {0,3}]
  %s4 = inlined_call_operand.hbm [shape: f32[16,512], index: 4, kind: output, shape index: {}]
  %s5 = sld [smem:[#allocation0]]
  $region69: #{block_forward.1} parent=0
    _
  %s7 = ssub.s32 1, %s5
  %s8 = scalar_select 0, %s7, %s5
  $region1: #{block_forward.1} parent=0
    #allocation3 [shape = 'u8[32768]{0}', space=vmem, size = 0x8000, scoped, tag = 'input window, operand 0, single buffered']
    #allocation4 [shape = 's32[2]{0}', space=sflag, size = 0x8, scoped, tag = 'scoped memory for block_forward.1']
    #allocation5 [shape = 's32[2]{0}', space=sflag, size = 0x8, scoped, tag = 'scoped memory for block_forward.1']
    #allocation6 [shape = 'u8[1048576]{0}', space=vmem, size = 0x100000, scoped, tag = 'input window, operand 1']
    #allocation7 [shape = 's32[2]{0}', space=sflag, size = 0x8, scoped, tag = 'scoped memory for block_forward.1']
    #allocation8 [shape = 'u8[32768]{0}', space=vmem, size = 0x8000, scoped, tag = 'input window, operand 3']
    #allocation9 [shape = 'u8[32768]{0}', space=vmem, size = 0x8000, scoped, tag = 'output window, operand 0']
    %9 = vsyncpa [#allocation4], 0
    %10 = vsyncpa [#allocation7], 0
    %s11 = scalar_lea.sflag [#allocation7], 1
    %12 = vsyncpa %s11, 0
    %13 = vsyncpa [#allocation5], 0
    %s14 = scalar_lea.sflag [#allocation5], 1
    %15 = vsyncpa %s14, 0
    loop: start=0, step=1, limit=4
    $region2: #{block_forward.1} parent=1 // loop_pre_header
      _
    $region3: #{block_forward.1} parent=1 // loop_header
      %s17 = sphi 0, %s21
      %p18 = scmp.ge.s32.totalorder %s17, 4
      %s24 = sphi 0, %s43
      %s25 = sphi 0, %s39
      %s26 = sphi 0, %s35
      %s27 = sphi 0, %s24
      %s28 = sphi 0, %s25
      %s29 = sphi 0, %s26
      %s30 = sphi 0, %s27
      %s31 = sphi 0, %s28
      %s32 = sphi 0, %s29
      %s48 = sphi 0, %s50
      %s51 = sphi 0, %s48
      %s52 = sphi 0, %s51
      %s68 = sphi 0, %s52
      %s76 = sphi 0, %s78
      %s79 = sphi 0, %s76
      %s80 = sphi 0, %s79
      %s96 = sphi 0, %s80
      %s102 = sphi 0, %s104
      %s105 = sphi 0, %s102
      %s106 = sphi 0, %s105
      %s122 = sphi 0, %s106
      %s130 = sphi 0, %s132
      %s133 = sphi 0, %s130
      %s134 = sphi 0, %s133
      %s150 = sphi 0, %s134
      %s158 = sphi 0, %s160
      %s161 = sphi 0, %s158
      %s162 = sphi 0, %s161
      %s178 = sphi 0, %s162
    $region4: #{block_forward.1} parent=1 // loop_header_branch
      %20 = sbr.rel (%p18) target = $region8
    $region5: #{block_forward.1} parent=1 // loop_body
      %s22 = ssub.s32 %s17, 1
      %s23 = ssub.s32 %s17, 2
      %s33 = sadd.s32 1, %s26
      %p34 = scmp.ge.s32.totalorder %s33, 1
      %s35 = scalar_select %p34, 0, %s33
      %s36 = sadd.s32 1, %s25
      %s37 = scalar_select %p34, %s36, %s25
      %p38 = scmp.ge.s32.totalorder %s37, 2
      %s39 = scalar_select %p38, 0, %s37
      %s40 = sadd.s32 1, %s24
      %s41 = scalar_select %p38, %s40, %s24
      %p42 = scmp.ge.s32.totalorder %s41, 1
      %s43 = scalar_select %p42, 0, %s41
      %s44 = ssub.s32 %s24, %s43
      %s45 = ssub.s32 %s26, %s35
      %s46 = sor.u32 %s44, %s45
      %p47 = scmp.eq.s32.totalorder %s46, 0
      %s49 = sadd.s32 %s48, 1
      %s50 = scalar_select %p47, %s48, %s49
      %p53 = pneg %p47
      %p54 = scmp.eq.s32.totalorder %s17, 1
      %p55 = por %p53, %p54
      %p56 = scmp.ne.s32.totalorder %s48, %s51
      %p57 = scmp.eq.s32.totalorder %s17, 0
      %p58 = por %p56, %p57
      %p59 = scmp.ne.s32.totalorder %s48, %s51
      %p60 = scmp.eq.s32.totalorder %s22, 1
      %p61 = por %p59, %p60
      %p62 = scmp.ne.s32.totalorder %s51, %s52
      %p63 = scmp.eq.s32.totalorder %s22, 0
      %p64 = por %p62, %p63
      %p65 = scmp.ne.s32.totalorder %s51, %s52
      %p66 = scmp.eq.s32.totalorder %s23, 1
      %p67 = por %p65, %p66
      %p69 = scmp.ne.s32.totalorder %s52, %s68
      %p70 = scmp.eq.s32.totalorder %s23, 0
      %p71 = por %p69, %p70
      %s72 = ssub.s32 %s26, %s35
      %s73 = ssub.s32 %s25, %s39
      %s74 = sor.u32 %s72, %s73
      %p75 = scmp.eq.s32.totalorder %s74, 0
      %s77 = sadd.s32 %s76, 1
      %s78 = scalar_select %p75, %s76, %s77
      %p81 = pneg %p75
      %p82 = scmp.eq.s32.totalorder %s17, 1
      %p83 = por %p81, %p82
      %p84 = scmp.ne.s32.totalorder %s76, %s79
      %p85 = scmp.eq.s32.totalorder %s17, 0
      %p86 = por %p84, %p85
      %p87 = scmp.ne.s32.totalorder %s76, %s79
      %p88 = scmp.eq.s32.totalorder %s22, 1
      %p89 = por %p87, %p88
      %p90 = scmp.ne.s32.totalorder %s79, %s80
      %p91 = scmp.eq.s32.totalorder %s22, 0
      %p92 = por %p90, %p91
      %p93 = scmp.ne.s32.totalorder %s79, %s80
      %p94 = scmp.eq.s32.totalorder %s23, 1
      %p95 = por %p93, %p94
      %p97 = scmp.ne.s32.totalorder %s80, %s96
      %p98 = scmp.eq.s32.totalorder %s23, 0
      %p99 = por %p97, %p98
      %s100 = ssub.s32 %s25, %s39
      %p101 = scmp.eq.s32.totalorder %s100, 0
      %s103 = sadd.s32 %s102, 1
      %s104 = scalar_select %p101, %s102, %s103
      %p107 = pneg %p101
      %p108 = scmp.eq.s32.totalorder %s17, 1
      %p109 = por %p107, %p108
      %p110 = scmp.ne.s32.totalorder %s102, %s105
      %p111 = scmp.eq.s32.totalorder %s17, 0
      %p112 = por %p110, %p111
      %p113 = scmp.ne.s32.totalorder %s102, %s105
      %p114 = scmp.eq.s32.totalorder %s22, 1
      %p115 = por %p113, %p114
      %p116 = scmp.ne.s32.totalorder %s105, %s106
      %p117 = scmp.eq.s32.totalorder %s22, 0
      %p118 = por %p116, %p117
      %p119 = scmp.ne.s32.totalorder %s105, %s106
      %p120 = scmp.eq.s32.totalorder %s23, 1
      %p121 = por %p119, %p120
      %p123 = scmp.ne.s32.totalorder %s106, %s122
      %p124 = scmp.eq.s32.totalorder %s23, 0
      %p125 = por %p123, %p124
      %s126 = ssub.s32 %s24, %s43
      %s127 = ssub.s32 %s25, %s39
      %s128 = sor.u32 %s126, %s127
      %p129 = scmp.eq.s32.totalorder %s128, 0
      %s131 = sadd.s32 %s130, 1
      %s132 = scalar_select %p129, %s130, %s131
      %p135 = pneg %p129
      %p136 = scmp.eq.s32.totalorder %s17, 1
      %p137 = por %p135, %p136
      %p138 = scmp.ne.s32.totalorder %s130, %s133
      %p139 = scmp.eq.s32.totalorder %s17, 0
      %p140 = por %p138, %p139
      %p141 = scmp.ne.s32.totalorder %s130, %s133
      %p142 = scmp.eq.s32.totalorder %s22, 1
      %p143 = por %p141, %p142
      %p144 = scmp.ne.s32.totalorder %s133, %s134
      %p145 = scmp.eq.s32.totalorder %s22, 0
      %p146 = por %p144, %p145
      %p147 = scmp.ne.s32.totalorder %s133, %s134
      %p148 = scmp.eq.s32.totalorder %s23, 1
      %p149 = por %p147, %p148
      %p151 = scmp.ne.s32.totalorder %s134, %s150
      %p152 = scmp.eq.s32.totalorder %s23, 0
      %p153 = por %p151, %p152
      %s154 = ssub.s32 %s24, %s43
      %s155 = ssub.s32 %s25, %s39
      %s156 = sor.u32 %s154, %s155
      %p157 = scmp.eq.s32.totalorder %s156, 0
      %s159 = sadd.s32 %s158, 1
      %s160 = scalar_select %p157, %s158, %s159
      %p163 = pneg %p157
      %p164 = scmp.eq.s32.totalorder %s17, 1
      %p165 = por %p163, %p164
      %p166 = scmp.ne.s32.totalorder %s158, %s161
      %p167 = scmp.eq.s32.totalorder %s17, 0
      %p168 = por %p166, %p167
      %p169 = scmp.ne.s32.totalorder %s158, %s161
      %p170 = scmp.eq.s32.totalorder %s22, 1
      %p171 = por %p169, %p170
      %p172 = scmp.ne.s32.totalorder %s161, %s162
      %p173 = scmp.eq.s32.totalorder %s22, 0
      %p174 = por %p172, %p173
      %p175 = scmp.ne.s32.totalorder %s161, %s162
      %p176 = scmp.eq.s32.totalorder %s23, 1
      %p177 = por %p175, %p176
      %p179 = scmp.ne.s32.totalorder %s162, %s178
      %p180 = scmp.eq.s32.totalorder %s23, 0
      %p181 = por %p179, %p180
      %p182 = scmp.le.s32.totalorder 1, %s17
      %p183 = scmp.lt.s32.totalorder %s17, 3
      %p184 = pnand %p182, %p183
      %p185 = pneg %p184
      // Predicated region
      $region9: #{block_forward.1} parent=5 // pred_check
        _
      $region10: #{block_forward.1} parent=5 // pred_check_branch
        %187 = sbr.rel (%p184) target = $region12
      $region11: #{block_forward.1} parent=5 // pred_region
        %s188 = ssub.s32 %s17, 1
        // Predicated region
        $region13: #{block_forward.1} parent=11 // pred_check
          %p189 = pneg %p64
        $region14: #{block_forward.1} parent=11 // pred_check_branch
          %191 = sbr.rel (%p189) target = $region16
        $region15: #{block_forward.1} parent=11 // pred_region
          %s192 = smul.u32 2, %s27
          %s193 = smul.u32 4, %s29
          %s195 = ssub.s32 1024, 1024
          %196 = vsyncadd [#allocation4], %s195
          %s197 = smul.addr %s192, 4
          %s198 = sadd.s32 %s193, %s197
          %s199 = smul.addr %s198, 128
          %s200 = scalar_lea.hbm %s0, %s199
          %s201 = sshll.u32 [#allocation3], 4
          %s202 = int_to_ptr.vmem [resolvable:$true] %s201
          %207 = dma.hbm_to_vmem [thread:$0]  %s200, 1024, %s202, [#allocation4], 512, 512, 32
        $region16: #{block_forward.1} parent=11 // pred_fallthru
          _
      $region12: #{block_forward.1} parent=5 // pred_fallthru
        _
      %p208 = scmp.lt.s32.totalorder %s17, 2
      // Predicated region
      $region17: #{block_forward.1} parent=5 // pred_check
        %p209 = pneg %p208
      $region18: #{block_forward.1} parent=5 // pred_check_branch
        %211 = sbr.rel (%p209) target = $region20
      $region19: #{block_forward.1} parent=5 // pred_region
        // Predicated region
        $region21: #{block_forward.1} parent=19 // pred_check
          %p212 = pneg %p86
        $region22: #{block_forward.1} parent=19 // pred_check_branch
          %214 = sbr.rel (%p212) target = $region24
        $region23: #{block_forward.1} parent=19 // pred_region
          %s215 = sand.u32 %s17, 1
          %s216 = scalar_lea.sflag [#allocation7], %s215
          %s217 = sand.u32 %s76, 1
          %s218 = smul.addr %s217, 1024
          %s219 = scalar_lea.vmem [#allocation6], %s218
          %s220 = smul.u32 64, %s26
          %s221 = smul.u32 2, %s25
          %s223 = ssub.s32 16384, 16384
          %224 = vsyncadd %s216, %s223
          %s225 = smul.addr %s220, 4
          %s226 = sadd.s32 %s221, %s225
          %s227 = smul.addr %s226, 128
          %s228 = scalar_lea.hbm %s1, %s227
          %s229 = sshll.u32 %s219, 4
          %s230 = int_to_ptr.vmem [resolvable:$true] %s229
          %235 = dma.hbm_to_vmem [thread:$0]  %s228, 16384, %s230, %s216, 512, 256, 16
        $region24: #{block_forward.1} parent=19 // pred_fallthru
          _
        // Predicated region
        $region25: #{block_forward.1} parent=19 // pred_check
          %p236 = pneg %p112
        $region26: #{block_forward.1} parent=19 // pred_check_branch
          %238 = sbr.rel (%p236) target = $region28
        $region27: #{block_forward.1} parent=19 // pred_region
          %s239 = smul.u32 2, %s25
          %p240 = scmp.lt.s32.totalorder %s239, 3
          %s241 = scalar_select %p240, %s239, 3
          %s242 = scalar_lea.vmem %s2, %s241
          %s243 = smul.u32 2, %s25
        $region28: #{block_forward.1} parent=19 // pred_fallthru
          _
        // Predicated region
        $region29: #{block_forward.1} parent=19 // pred_check
          %p244 = pneg %p140
        $region30: #{block_forward.1} parent=19 // pred_check_branch
          %246 = sbr.rel (%p244) target = $region32
        $region31: #{block_forward.1} parent=19 // pred_region
          %s247 = sand.u32 %s17, 1
          %s248 = scalar_lea.sflag [#allocation7], %s247
          %s249 = sand.u32 %s130, 1
          %s250 = smul.addr %s249, 32
          %s251 = scalar_lea.vmem [#allocation8], %s250
          %s252 = smul.u32 2, %s24
          %s253 = smul.u32 2, %s25
          %s255 = ssub.s32 512, 512
          %256 = vsyncadd %s248, %s255
          %s257 = smul.addr %s252, 4
          %s258 = sadd.s32 %s253, %s257
          %s259 = smul.addr %s258, 128
          %s260 = scalar_lea.hbm %s3, %s259
          %s261 = sshll.u32 %s251, 4
          %s262 = int_to_ptr.vmem [resolvable:$true] %s261
          %267 = dma.hbm_to_vmem [thread:$0]  %s260, 512, %s262, %s248, 512, 256, 16
        $region32: #{block_forward.1} parent=19 // pred_fallthru
          _
      $region20: #{block_forward.1} parent=5 // pred_fallthru
        _
      %p268 = scmp.le.s32.totalorder 1, %s17
      %p269 = scmp.lt.s32.totalorder %s17, 3
      %p270 = pnand %p268, %p269
      %p271 = pneg %p270
      // Predicated region
      $region33: #{block_forward.1} parent=5 // pred_check
        _
      $region34: #{block_forward.1} parent=5 // pred_check_branch
        %273 = sbr.rel (%p270) target = $region36
      $region35: #{block_forward.1} parent=5 // pred_region
        %s274 = ssub.s32 %s17, 1
        // Predicated region
        $region37: #{block_forward.1} parent=35 // pred_check
          %p275 = pneg %p64
        $region38: #{block_forward.1} parent=35 // pred_check_branch
          %277 = sbr.rel (%p275) target = $region40
        $region39: #{block_forward.1} parent=35 // pred_region
          %278 = dma.done [#allocation4], 1024
        $region40: #{block_forward.1} parent=35 // pred_fallthru
          _
        %s279 = sand.u32 %s22, 1
        %s280 = scalar_lea.sflag [#allocation7], %s279
        %s281 = sand.u32 %s79, 1
        %s282 = smul.addr %s281, 1024
        %s283 = scalar_lea.vmem [#allocation6], %s282
        // Predicated region
        $region41: #{block_forward.1} parent=35 // pred_check
          %p284 = pneg %p92
        $region42: #{block_forward.1} parent=35 // pred_check_branch
          %286 = sbr.rel (%p284) target = $region44
        $region43: #{block_forward.1} parent=35 // pred_region
          %287 = dma.done %s280, 16384
        $region44: #{block_forward.1} parent=35 // pred_fallthru
          _
        %s288 = sand.u32 %s22, 1
        %s289 = scalar_lea.sflag [#allocation7], %s288
        %s290 = sand.u32 %s133, 1
        %s291 = smul.addr %s290, 32
        %s292 = scalar_lea.vmem [#allocation8], %s291
        // Predicated region
        $region45: #{block_forward.1} parent=35 // pred_check
          %p293 = pneg %p146
        $region46: #{block_forward.1} parent=35 // pred_check_branch
          %295 = sbr.rel (%p293) target = $region48
        $region47: #{block_forward.1} parent=35 // pred_region
          %296 = dma.done %s289, 512
        $region48: #{block_forward.1} parent=35 // pred_fallthru
          _
        %p297 = pneg %p64
        %p298 = pneg %p61
        %s299 = sand.u32 %s22, 1
        %s300 = scalar_lea.sflag [#allocation7], %s299
        %s301 = sand.u32 %s79, 1
        %s302 = smul.addr %s301, 1024
        %s303 = scalar_lea.vmem [#allocation6], %s302
        %p304 = pneg %p92
        %p305 = pneg %p89
        %s306 = smul.u32 2, %s28
        %p307 = scmp.lt.s32.totalorder %s306, 3
        %s308 = scalar_select %p307, %s306, 3
        %s309 = scalar_lea.vmem %s2, %s308
        %p310 = pneg %p118
        %p311 = pneg %p115
        %s312 = sand.u32 %s22, 1
        %s313 = scalar_lea.sflag [#allocation7], %s312
        %s314 = sand.u32 %s133, 1
        %s315 = smul.addr %s314, 32
        %s316 = scalar_lea.vmem [#allocation8], %s315
        %p317 = pneg %p146
        %p318 = pneg %p143
        %p319 = pneg %p174
        %p320 = pneg %p171
        %s321 = sand.u32 %s161, 1
        %s322 = scalar_lea.sflag [#allocation5], %s321
        %s323 = sand.u32 %s161, 1
        %s324 = smul.addr %s323, 32
        %s325 = scalar_lea.vmem [#allocation9], %s324
        %s326 = smul.u32 2, %s27
        %s327 = smul.u32 4, %s29
        %s328 = smul.u32 64, %s29
        %s329 = smul.u32 2, %s28
        %s330 = smul.u32 2, %s28
        %p331 = scmp.lt.s32.totalorder %s330, 3
        %s332 = scalar_select %p331, %s330, 3
        %s333 = scalar_lea.vmem %s2, %s332
        %s334 = smul.u32 2, %s28
        %s335 = smul.u32 2, %s27
        %s336 = smul.u32 2, %s28
        %s337 = smul.u32 2, %s27
        %s338 = smul.u32 2, %s28
        %p339 = scmp.eq.s32.totalorder %s29, 0
        // Predicated region
        $region49: #{block_forward.1} parent=35 // pred_check
          %p340 = pneg %p339
        $region50: #{block_forward.1} parent=35 // pred_check_branch
          %342 = sbr.rel (%p340) target = $region52
        $region51: #{block_forward.1} parent=35 // pred_region
          %343 = vst [vmem:[#allocation2] sm:$0xff] 0.0
          %344 = vst [vmem:[#allocation2 + $0x8] sm:$0xff] 0.0
          %345 = vst [vmem:[#allocation2 + $0x10] sm:$0xff] 0.0
          %346 = vst [vmem:[#allocation2 + $0x18] sm:$0xff] 0.0
        $region52: #{block_forward.1} parent=35 // pred_fallthru
          _
        %v347 = vld [vmem:[#allocation2] sm:$0xff]
        %v348 = vld [vmem:[#allocation2 + $0x8] sm:$0xff]
        %v349 = vld [vmem:[#allocation2 + $0x10] sm:$0xff]
        %v350 = vld [vmem:[#allocation2 + $0x18] sm:$0xff]
        %v351 = vld [vmem:[#allocation3] sm:$0xff]
        %v352 = vld [vmem:[#allocation3 + $0x8] sm:$0xff]
        %v353 = vld [vmem:[#allocation3 + $0x10] sm:$0xff]
        %v354 = vld [vmem:[#allocation3 + $0x18] sm:$0xff]
        %v355 = vld [vmem:[#allocation3 + $0x20] sm:$0xff]
        %v356 = vld [vmem:[#allocation3 + $0x28] sm:$0xff]
        %v357 = vld [vmem:[#allocation3 + $0x30] sm:$0xff]
        %v358 = vld [vmem:[#allocation3 + $0x38] sm:$0xff]
        %v359 = vld [vmem:[%s283] sm:$0xff]
        %v360 = vld [vmem:[%s283 + $0x8] sm:$0xff]
        %v361 = vld [vmem:[%s283 + $0x10] sm:$0xff]
        %v362 = vld [vmem:[%s283 + $0x18] sm:$0xff]
        %v363 = vld [vmem:[%s283 + $0x20] sm:$0xff]
        %v364 = vld [vmem:[%s283 + $0x28] sm:$0xff]
        %v365 = vld [vmem:[%s283 + $0x30] sm:$0xff]
        %v366 = vld [vmem:[%s283 + $0x38] sm:$0xff]
        %v367 = vld [vmem:[%s283 + $0x40] sm:$0xff]
        %v368 = vld [vmem:[%s283 + $0x48] sm:$0xff]
        %v369 = vld [vmem:[%s283 + $0x50] sm:$0xff]
        %v370 = vld [vmem:[%s283 + $0x58] sm:$0xff]
        %v371 = vld [vmem:[%s283 + $0x60] sm:$0xff]
        %v372 = vld [vmem:[%s283 + $0x68] sm:$0xff]
        %v373 = vld [vmem:[%s283 + $0x70] sm:$0xff]
        %v374 = vld [vmem:[%s283 + $0x78] sm:$0xff]
        %v375 = vld [vmem:[%s283 + $0x80] sm:$0xff]
        %v376 = vld [vmem:[%s283 + $0x88] sm:$0xff]
        %v377 = vld [vmem:[%s283 + $0x90] sm:$0xff]
        %v378 = vld [vmem:[%s283 + $0x98] sm:$0xff]
        %v379 = vld [vmem:[%s283 + $0xa0] sm:$0xff]
        %v380 = vld [vmem:[%s283 + $0xa8] sm:$0xff]
        %v381 = vld [vmem:[%s283 + $0xb0] sm:$0xff]
        %v382 = vld [vmem:[%s283 + $0xb8] sm:$0xff]
        %v383 = vld [vmem:[%s283 + $0xc0] sm:$0xff]
        %v384 = vld [vmem:[%s283 + $0xc8] sm:$0xff]
        %v385 = vld [vmem:[%s283 + $0xd0] sm:$0xff]
        %v386 = vld [vmem:[%s283 + $0xd8] sm:$0xff]
        %v387 = vld [vmem:[%s283 + $0xe0] sm:$0xff]
        %v388 = vld [vmem:[%s283 + $0xe8] sm:$0xff]
        %v389 = vld [vmem:[%s283 + $0xf0] sm:$0xff]
        %v390 = vld [vmem:[%s283 + $0xf8] sm:$0xff]
        %v391 = vld [vmem:[%s283 + $0x100] sm:$0xff]
        %v392 = vld [vmem:[%s283 + $0x108] sm:$0xff]
        %v393 = vld [vmem:[%s283 + $0x110] sm:$0xff]
        %v394 = vld [vmem:[%s283 + $0x118] sm:$0xff]
        %v395 = vld [vmem:[%s283 + $0x120] sm:$0xff]
        %v396 = vld [vmem:[%s283 + $0x128] sm:$0xff]
        %v397 = vld [vmem:[%s283 + $0x130] sm:$0xff]
        %v398 = vld [vmem:[%s283 + $0x138] sm:$0xff]
        %v399 = vld [vmem:[%s283 + $0x140] sm:$0xff]
        %v400 = vld [vmem:[%s283 + $0x148] sm:$0xff]
        %v401 = vld [vmem:[%s283 + $0x150] sm:$0xff]
        %v402 = vld [vmem:[%s283 + $0x158] sm:$0xff]
        %v403 = vld [vmem:[%s283 + $0x160] sm:$0xff]
        %v404 = vld [vmem:[%s283 + $0x168] sm:$0xff]
        %v405 = vld [vmem:[%s283 + $0x170] sm:$0xff]
        %v406 = vld [vmem:[%s283 + $0x178] sm:$0xff]
        %v407 = vld [vmem:[%s283 + $0x180] sm:$0xff]
        %v408 = vld [vmem:[%s283 + $0x188] sm:$0xff]
        %v409 = vld [vmem:[%s283 + $0x190] sm:$0xff]
        %v410 = vld [vmem:[%s283 + $0x198] sm:$0xff]
        %v411 = vld [vmem:[%s283 + $0x1a0] sm:$0xff]
        %v412 = vld [vmem:[%s283 + $0x1a8] sm:$0xff]
        %v413 = vld [vmem:[%s283 + $0x1b0] sm:$0xff]
        %v414 = vld [vmem:[%s283 + $0x1b8] sm:$0xff]
        %v415 = vld [vmem:[%s283 + $0x1c0] sm:$0xff]
        %v416 = vld [vmem:[%s283 + $0x1c8] sm:$0xff]
        %v417 = vld [vmem:[%s283 + $0x1d0] sm:$0xff]
        %v418 = vld [vmem:[%s283 + $0x1d8] sm:$0xff]
        %v419 = vld [vmem:[%s283 + $0x1e0] sm:$0xff]
        %v420 = vld [vmem:[%s283 + $0x1e8] sm:$0xff]
        %v421 = vld [vmem:[%s283 + $0x1f0] sm:$0xff]
        %v422 = vld [vmem:[%s283 + $0x1f8] sm:$0xff]
        %v423 = vld [vmem:[%s283 + $0x200] sm:$0xff]
        %v424 = vld [vmem:[%s283 + $0x208] sm:$0xff]
        %v425 = vld [vmem:[%s283 + $0x210] sm:$0xff]
        %v426 = vld [vmem:[%s283 + $0x218] sm:$0xff]
        %v427 = vld [vmem:[%s283 + $0x220] sm:$0xff]
        %v428 = vld [vmem:[%s283 + $0x228] sm:$0xff]
        %v429 = vld [vmem:[%s283 + $0x230] sm:$0xff]
        %v430 = vld [vmem:[%s283 + $0x238] sm:$0xff]
        %v431 = vld [vmem:[%s283 + $0x240] sm:$0xff]
        %v432 = vld [vmem:[%s283 + $0x248] sm:$0xff]
        %v433 = vld [vmem:[%s283 + $0x250] sm:$0xff]
        %v434 = vld [vmem:[%s283 + $0x258] sm:$0xff]
        %v435 = vld [vmem:[%s283 + $0x260] sm:$0xff]
        %v436 = vld [vmem:[%s283 + $0x268] sm:$0xff]
        %v437 = vld [vmem:[%s283 + $0x270] sm:$0xff]
        %v438 = vld [vmem:[%s283 + $0x278] sm:$0xff]
        %v439 = vld [vmem:[%s283 + $0x280] sm:$0xff]
        %v440 = vld [vmem:[%s283 + $0x288] sm:$0xff]
        %v441 = vld [vmem:[%s283 + $0x290] sm:$0xff]
        %v442 = vld [vmem:[%s283 + $0x298] sm:$0xff]
        %v443 = vld [vmem:[%s283 + $0x2a0] sm:$0xff]
        %v444 = vld [vmem:[%s283 + $0x2a8] sm:$0xff]
        %v445 = vld [vmem:[%s283 + $0x2b0] sm:$0xff]
        %v446 = vld [vmem:[%s283 + $0x2b8] sm:$0xff]
        %v447 = vld [vmem:[%s283 + $0x2c0] sm:$0xff]
        %v448 = vld [vmem:[%s283 + $0x2c8] sm:$0xff]
        %v449 = vld [vmem:[%s283 + $0x2d0] sm:$0xff]
        %v450 = vld [vmem:[%s283 + $0x2d8] sm:$0xff]
        %v451 = vld [vmem:[%s283 + $0x2e0] sm:$0xff]
        %v452 = vld [vmem:[%s283 + $0x2e8] sm:$0xff]
        %v453 = vld [vmem:[%s283 + $0x2f0] sm:$0xff]
        %v454 = vld [vmem:[%s283 + $0x2f8] sm:$0xff]
        %v455 = vld [vmem:[%s283 + $0x300] sm:$0xff]
        %v456 = vld [vmem:[%s283 + $0x308] sm:$0xff]
        %v457 = vld [vmem:[%s283 + $0x310] sm:$0xff]
        %v458 = vld [vmem:[%s283 + $0x318] sm:$0xff]
        %v459 = vld [vmem:[%s283 + $0x320] sm:$0xff]
        %v460 = vld [vmem:[%s283 + $0x328] sm:$0xff]
        %v461 = vld [vmem:[%s283 + $0x330] sm:$0xff]
        %v462 = vld [vmem:[%s283 + $0x338] sm:$0xff]
        %v463 = vld [vmem:[%s283 + $0x340] sm:$0xff]
        %v464 = vld [vmem:[%s283 + $0x348] sm:$0xff]
        %v465 = vld [vmem:[%s283 + $0x350] sm:$0xff]
        %v466 = vld [vmem:[%s283 + $0x358] sm:$0xff]
        %v467 = vld [vmem:[%s283 + $0x360] sm:$0xff]
        %v468 = vld [vmem:[%s283 + $0x368] sm:$0xff]
        %v469 = vld [vmem:[%s283 + $0x370] sm:$0xff]
        %v470 = vld [vmem:[%s283 + $0x378] sm:$0xff]
        %v471 = vld [vmem:[%s283 + $0x380] sm:$0xff]
        %v472 = vld [vmem:[%s283 + $0x388] sm:$0xff]
        %v473 = vld [vmem:[%s283 + $0x390] sm:$0xff]
        %v474 = vld [vmem:[%s283 + $0x398] sm:$0xff]
        %v475 = vld [vmem:[%s283 + $0x3a0] sm:$0xff]
        %v476 = vld [vmem:[%s283 + $0x3a8] sm:$0xff]
        %v477 = vld [vmem:[%s283 + $0x3b0] sm:$0xff]
        %v478 = vld [vmem:[%s283 + $0x3b8] sm:$0xff]
        %v479 = vld [vmem:[%s283 + $0x3c0] sm:$0xff]
        %v480 = vld [vmem:[%s283 + $0x3c8] sm:$0xff]
        %v481 = vld [vmem:[%s283 + $0x3d0] sm:$0xff]
        %v482 = vld [vmem:[%s283 + $0x3d8] sm:$0xff]
        %v483 = vld [vmem:[%s283 + $0x3e0] sm:$0xff]
        %v484 = vld [vmem:[%s283 + $0x3e8] sm:$0xff]
        %v485 = vld [vmem:[%s283 + $0x3f0] sm:$0xff]
        %v486 = vld [vmem:[%s283 + $0x3f8] sm:$0xff]
        %487 = vmatprep.subr.mxu0 %v360
        %488 = vmatpush1.msra.mxu0 %v359
        %489 = vmatprep.subr.mxu0 %v362
        %490 = vmatpush1.msra.mxu0 %v361
        %491 = vmatprep.subr.mxu0 %v364
        %492 = vmatpush1.msra.mxu0 %v363
        %493 = vmatprep.subr.mxu0 %v366
        %494 = vmatpush1.msra.mxu0 %v365
        %495 = vmatprep.subr.mxu0 %v368
        %496 = vmatpush1.msra.mxu0 %v367
        %497 = vmatprep.subr.mxu0 %v370
        %498 = vmatpush1.msra.mxu0 %v369
        %499 = vmatprep.subr.mxu0 %v372
        %500 = vmatpush1.msra.mxu0 %v371
        %501 = vmatprep.subr.mxu0 %v374
        %502 = vmatpush1.msra.mxu0 %v373
        %503 = vmatprep.subr.mxu0 %v376
        %504 = vmatpush1.msra.mxu0 %v375
        %505 = vmatprep.subr.mxu0 %v378
        %506 = vmatpush1.msra.mxu0 %v377
        %507 = vmatprep.subr.mxu0 %v380
        %508 = vmatpush1.msra.mxu0 %v379
        %509 = vmatprep.subr.mxu0 %v382
        %510 = vmatpush1.msra.mxu0 %v381
        %511 = vmatprep.subr.mxu0 %v384
        %512 = vmatpush1.msra.mxu0 %v383
        %513 = vmatprep.subr.mxu0 %v386
        %514 = vmatpush1.msra.mxu0 %v385
        %515 = vmatprep.subr.mxu0 %v388
        %516 = vmatpush1.msra.mxu0 %v387
        %517 = vmatprep.subr.mxu0 %v390
        %518 = vmatpush1.msra.mxu0 %v389
        %519 = vmatprep.subr.mxu0 %v392
        %520 = vmatpush1.msra.mxu0 %v391
        %521 = vmatprep.subr.mxu0 %v394
        %522 = vmatpush1.msra.mxu0 %v393
        %523 = vmatprep.subr.mxu0 %v396
        %524 = vmatpush1.msra.mxu0 %v395
        %525 = vmatprep.subr.mxu0 %v398
        %526 = vmatpush1.msra.mxu0 %v397
        %527 = vmatprep.subr.mxu0 %v400
        %528 = vmatpush1.msra.mxu0 %v399
        %529 = vmatprep.subr.mxu0 %v402
        %530 = vmatpush1.msra.mxu0 %v401
        %531 = vmatprep.subr.mxu0 %v404
        %532 = vmatpush1.msra.mxu0 %v403
        %533 = vmatprep.subr.mxu0 %v406
        %534 = vmatpush1.msra.mxu0 %v405
        %535 = vmatprep.subr.mxu0 %v408
        %536 = vmatpush1.msra.mxu0 %v407
        %537 = vmatprep.subr.mxu0 %v410
        %538 = vmatpush1.msra.mxu0 %v409
        %539 = vmatprep.subr.mxu0 %v412
        %540 = vmatpush1.msra.mxu0 %v411
        %541 = vmatprep.subr.mxu0 %v414
        %542 = vmatpush1.msra.mxu0 %v413
        %543 = vmatprep.subr.mxu0 %v416
        %544 = vmatpush1.msra.mxu0 %v415
        %545 = vmatprep.subr.mxu0 %v418
        %546 = vmatpush1.msra.mxu0 %v417
        %547 = vmatprep.subr.mxu0 %v420
        %548 = vmatpush1.msra.mxu0 %v419
        %549 = vmatprep.subr.mxu0 %v422
        %550 = vmatpush1.msra.mxu0 %v421
        %551 = vmatprep.mubr.f32.mxu0 %v352
        %552 = vmatmul.mubr.f32.gmra.mrb[0].mxu0 %v351
        %v553 = vpop.f32.mrb[0].mxu0
        %v554 = vadd.f32 0.0, %v553
        %v555 = vpop.f32.mrb[0].mxu0
        %v556 = vadd.f32 0.0, %v555
        %557 = vmatprep.mubr.f32.mxu0 %v356
        %558 = vmatmul.mubr.f32.gmra.mrb[0].mxu0 %v355
        %v559 = vpop.f32.mrb[0].mxu0
        %v560 = vadd.f32 0.0, %v559
        %v561 = vpop.f32.mrb[0].mxu0
        %v562 = vadd.f32 0.0, %v561
        %563 = vdwg.mxu0
        %564 = vmatprep.subr.mxu0 %v424
        %565 = vmatpush1.msra.mxu0 %v423
        %566 = vmatprep.subr.mxu0 %v426
        %567 = vmatpush1.msra.mxu0 %v425
        %568 = vmatprep.subr.mxu0 %v428
        %569 = vmatpush1.msra.mxu0 %v427
        %570 = vmatprep.subr.mxu0 %v430
        %571 = vmatpush1.msra.mxu0 %v429
        %572 = vmatprep.subr.mxu0 %v432
        %573 = vmatpush1.msra.mxu0 %v431
        %574 = vmatprep.subr.mxu0 %v434
        %575 = vmatpush1.msra.mxu0 %v433
        %576 = vmatprep.subr.mxu0 %v436
        %577 = vmatpush1.msra.mxu0 %v435
        %578 = vmatprep.subr.mxu0 %v438
        %579 = vmatpush1.msra.mxu0 %v437
        %580 = vmatprep.subr.mxu0 %v440
        %581 = vmatpush1.msra.mxu0 %v439
        %582 = vmatprep.subr.mxu0 %v442
        %583 = vmatpush1.msra.mxu0 %v441
        %584 = vmatprep.subr.mxu0 %v444
        %585 = vmatpush1.msra.mxu0 %v443
        %586 = vmatprep.subr.mxu0 %v446
        %587 = vmatpush1.msra.mxu0 %v445
        %588 = vmatprep.subr.mxu0 %v448
        %589 = vmatpush1.msra.mxu0 %v447
        %590 = vmatprep.subr.mxu0 %v450
        %591 = vmatpush1.msra.mxu0 %v449
        %592 = vmatprep.subr.mxu0 %v452
        %593 = vmatpush1.msra.mxu0 %v451
        %594 = vmatprep.subr.mxu0 %v454
        %595 = vmatpush1.msra.mxu0 %v453
        %596 = vmatprep.subr.mxu0 %v456
        %597 = vmatpush1.msra.mxu0 %v455
        %598 = vmatprep.subr.mxu0 %v458
        %599 = vmatpush1.msra.mxu0 %v457
        %600 = vmatprep.subr.mxu0 %v460
        %601 = vmatpush1.msra.mxu0 %v459
        %602 = vmatprep.subr.mxu0 %v462
        %603 = vmatpush1.msra.mxu0 %v461
        %604 = vmatprep.subr.mxu0 %v464
        %605 = vmatpush1.msra.mxu0 %v463
        %606 = vmatprep.subr.mxu0 %v466
        %607 = vmatpush1.msra.mxu0 %v465
        %608 = vmatprep.subr.mxu0 %v468
        %609 = vmatpush1.msra.mxu0 %v467
        %610 = vmatprep.subr.mxu0 %v470
        %611 = vmatpush1.msra.mxu0 %v469
        %612 = vmatprep.subr.mxu0 %v472
        %613 = vmatpush1.msra.mxu0 %v471
        %614 = vmatprep.subr.mxu0 %v474
        %615 = vmatpush1.msra.mxu0 %v473
        %616 = vmatprep.subr.mxu0 %v476
        %617 = vmatpush1.msra.mxu0 %v475
        %618 = vmatprep.subr.mxu0 %v478
        %619 = vmatpush1.msra.mxu0 %v477
        %620 = vmatprep.subr.mxu0 %v480
        %621 = vmatpush1.msra.mxu0 %v479
        %622 = vmatprep.subr.mxu0 %v482
        %623 = vmatpush1.msra.mxu0 %v481
        %624 = vmatprep.subr.mxu0 %v484
        %625 = vmatpush1.msra.mxu0 %v483
        %626 = vmatprep.subr.mxu0 %v486
        %627 = vmatpush1.msra.mxu0 %v485
        %628 = vmatprep.mubr.f32.mxu0 %v354
        %629 = vmatmul.mubr.f32.gmra.mrb[0].mxu0 %v353
        %v630 = vpop.f32.mrb[0].mxu0
        %v631 = vadd.f32 %v554, %v630
        %v632 = vpop.f32.mrb[0].mxu0
        %v633 = vadd.f32 %v556, %v632
        %634 = vmatprep.mubr.f32.mxu0 %v358
        %635 = vmatmul.mubr.f32.gmra.mrb[0].mxu0 %v357
        %v636 = vpop.f32.mrb[0].mxu0
        %v637 = vadd.f32 %v560, %v636
        %v638 = vpop.f32.mrb[0].mxu0
        %v639 = vadd.f32 %v562, %v638
        %640 = vdwg.mxu0
        %v641 = vadd.f32 %v347, %v631
        %v642 = vadd.f32 %v348, %v633
        %v643 = vadd.f32 %v349, %v637
        %v644 = vadd.f32 %v350, %v639
        %645 = vst [vmem:[#allocation2] sm:$0xff] %v641
        %646 = vst [vmem:[#allocation2 + $0x8] sm:$0xff] %v642
        %647 = vst [vmem:[#allocation2 + $0x10] sm:$0xff] %v643
        %648 = vst [vmem:[#allocation2 + $0x18] sm:$0xff] %v644
        // Predicated region
        $region53: #{block_forward.1} parent=35 // pred_check
          %p649 = pneg %p339
        $region54: #{block_forward.1} parent=35 // pred_check_branch
          %651 = sbr.rel (%p649) target = $region56
        $region55: #{block_forward.1} parent=35 // pred_region
          %v652 = vld [vmem:[#allocation2] sm:$0xff]
          %v653 = vld [vmem:[#allocation2 + $0x8] sm:$0xff]
          %v654 = vld [vmem:[#allocation2 + $0x10] sm:$0xff]
          %v655 = vld [vmem:[#allocation2 + $0x18] sm:$0xff]
          %v656 = vld [vmem:[%s333] sm:$0x3]
          %v658 = vlaneseq
          %v659 = vshrl.u32 %v658, 7
          %v660 = vsub.s32 0, %v659
          %v661 = vrot.slane %v656, %v660
          %v662 = vlaneseq
          %v663 = vshrl.u32 %v662, 7
          %v664 = vsub.s32 1, %v663
          %v665 = vrot.slane %v656, %v664
          %v668 = vadd.f32 %v652, %v661
          %v669 = vadd.f32 %v653, %v665
          %v670 = vadd.f32 %v654, %v661
          %v671 = vadd.f32 %v655, %v665
          %v672 = vmul.f32 %v668, 0.5
          %v673 = vmul.f32 %v669, 0.5
          %v674 = vmul.f32 %v670, 0.5
          %v675 = vmul.f32 %v671, 0.5
          %v676 = vmul.f32 %v668, 0.70710677
          %v677 = vmul.f32 %v669, 0.70710677
          %v678 = vmul.f32 %v670, 0.70710677
          %v679 = vmul.f32 %v671, 0.70710677
          %v680 = verf.f32.pop %v676
          %v681 = verf.f32.pop %v677
          %v682 = verf.f32.pop %v678
          %v683 = verf.f32.pop %v679
          %v684 = vadd.f32 %v680, 1.0
          %v685 = vadd.f32 %v681, 1.0
          %v686 = vadd.f32 %v682, 1.0
          %v687 = vadd.f32 %v683, 1.0
          %v688 = vmul.f32 %v672, %v684
          %v689 = vmul.f32 %v673, %v685
          %v690 = vmul.f32 %v674, %v686
          %v691 = vmul.f32 %v675, %v687
          %v692 = vld [vmem:[%s292] sm:$0xff]
          %v693 = vld [vmem:[%s292 + $0x8] sm:$0xff]
          %v694 = vld [vmem:[%s292 + $0x10] sm:$0xff]
          %v695 = vld [vmem:[%s292 + $0x18] sm:$0xff]
          %v696 = vadd.f32 %v688, %v692
          %v697 = vadd.f32 %v689, %v693
          %v698 = vadd.f32 %v690, %v694
          %v699 = vadd.f32 %v691, %v695
          %700 = vst [vmem:[%s325] sm:$0xff] %v696
          %701 = vst [vmem:[%s325 + $0x8] sm:$0xff] %v697
          %702 = vst [vmem:[%s325 + $0x10] sm:$0xff] %v698
          %703 = vst [vmem:[%s325 + $0x18] sm:$0xff] %v699
        $region56: #{block_forward.1} parent=35 // pred_fallthru
          _
        %s704 = sand.u32 %s161, 1
        %s705 = scalar_lea.sflag [#allocation5], %s704
        %s706 = sand.u32 %s161, 1
        %s707 = smul.addr %s706, 32
        %s708 = scalar_lea.vmem [#allocation9], %s707
        // Predicated region
        $region57: #{block_forward.1} parent=35 // pred_check
          %p709 = pneg %p171
        $region58: #{block_forward.1} parent=35 // pred_check_branch
          %711 = sbr.rel (%p709) target = $region60
        $region59: #{block_forward.1} parent=35 // pred_region
          %s712 = smul.u32 2, %s27
          %s713 = smul.u32 2, %s28
          %s715 = ssub.s32 512, 512
          %716 = vsyncadd %s705, %s715
          %s717 = smul.addr %s712, 4
          %s718 = sadd.s32 %s713, %s717
          %s719 = smul.addr %s718, 128
          %s720 = scalar_lea.hbm %s4, %s719
          %s721 = sshll.u32 %s708, 4
          %s722 = int_to_ptr.vmem [resolvable:$true] %s721
          %727 = dma.vmem_to_hbm [thread:$0]  %s722, 512, %s720, %s705, 256, 512, 16
        $region60: #{block_forward.1} parent=35 // pred_fallthru
          _
      $region36: #{block_forward.1} parent=5 // pred_fallthru
        _
      %p728 = scmp.le.s32.totalorder 2, %s17
      // Predicated region
      $region61: #{block_forward.1} parent=5 // pred_check
        %p729 = pneg %p728
      $region62: #{block_forward.1} parent=5 // pred_check_branch
        %731 = sbr.rel (%p729) target = $region64
      $region63: #{block_forward.1} parent=5 // pred_region
        %s732 = ssub.s32 %s17, 2
        // Predicated region
        $region65: #{block_forward.1} parent=63 // pred_check
          %p733 = pneg %p177
        $region66: #{block_forward.1} parent=63 // pred_check_branch
          %735 = sbr.rel (%p733) target = $region68
        $region67: #{block_forward.1} parent=63 // pred_region
          %s736 = sand.u32 %s162, 1
          %s737 = scalar_lea.sflag [#allocation5], %s736
          %s738 = sand.u32 %s162, 1
          %s739 = smul.addr %s738, 32
          %s740 = scalar_lea.vmem [#allocation9], %s739
          %741 = dma.done %s737, 512
        $region68: #{block_forward.1} parent=63 // pred_fallthru
          _
      $region64: #{block_forward.1} parent=5 // pred_fallthru
        _
    $region6: #{block_forward.1} parent=1 // loop_footer
      %s21 = sadd.s32 1, %s17
    $region7: #{block_forward.1} parent=1 // loop_footer_branch
      %16 = sbr.rel target = $region3
    $region8: #{block_forward.1} parent=1 // loop_exit
      _
    %742 = vsyncpa [#allocation4], 1
    %s743 = scalar_lea.sflag [#allocation4], 1
    %744 = vsyncpa %s743, 1
    %745 = vsyncpa [#allocation7], 1
    %s746 = scalar_lea.sflag [#allocation7], 1
    %747 = vsyncpa %s746, 1
    %748 = vsyncpa [#allocation5], 1
    %s749 = scalar_lea.sflag [#allocation5], 1
    %750 = vsyncpa %s749, 1

</llo_original>
